<compile_context>
chip_gen: v7x
topology: tpu7x:2x2x1
jax: 0.10.0
libtpu: 0.0.40
codegen_flags: <defaults>
</compile_context>

<pallas_src>
import jax
import jax.numpy as jnp
from jax.experimental import pallas as pl
from jax.experimental.pallas import tpu as pltpu


def _attention_fusion_kernel(e1_ref, e2_ref, w_ref, b_ref, out_ref):
    e1 = e1_ref[...]                      # (TB, D)
    e2 = e2_ref[...]                      # (TB, D)
    w = w_ref[...]                        # (4, D): [w_att1; w_att2; w_fc0; w_fc1]

    # Six row dot-products in a single sweep over the tile
    # (VPU multiply + XLU lane reduction; both have slack in this mem-bound kernel).
    s1 = jnp.sum(e1 * w[0:1, :], axis=-1, keepdims=True) + b_ref[0, 0]   # attention_e1(e1)
    s2 = jnp.sum(e2 * w[1:2, :], axis=-1, keepdims=True) + b_ref[0, 1]   # attention_e2(e2)
    p10 = jnp.sum(e1 * w[2:3, :], axis=-1, keepdims=True)                # e1 . wfc_0
    p11 = jnp.sum(e1 * w[3:4, :], axis=-1, keepdims=True)                # e1 . wfc_1
    p20 = jnp.sum(e2 * w[2:3, :], axis=-1, keepdims=True)                # e2 . wfc_0
    p21 = jnp.sum(e2 * w[3:4, :], axis=-1, keepdims=True)                # e2 . wfc_1

    a1 = jax.nn.sigmoid(s1)
    a2 = jax.nn.sigmoid(s2)
    # a1n + a2n == 1 and fc is linear, so
    #   logit_j = a1n*(e1.wfc_j) + a2n*(e2.wfc_j) + bfc_j
    #           = (e2.wfc_j) + a1n*((e1.wfc_j) - (e2.wfc_j)) + bfc_j
    a1n = a1 * pl.reciprocal(a1 + a2, approx=False)
    l0 = p20 + a1n * (p10 - p20) + b_ref[0, 2]
    l1 = p21 + a1n * (p11 - p21) + b_ref[0, 3]
    out_ref[...] = jnp.concatenate([l0, l1], axis=-1).astype(out_ref.dtype)


def attention_fusion_forward(e1, e2, params, *, block_b=None):
    """Fused forward pass. e1, e2: (B, D) float32. Returns (B, 2) logits."""
    B, D = e1.shape
    w1, b1, w2, b2, wfc, bfc = params

    # One fused weight block + one fused SMEM bias block.
    w_all = jnp.concatenate([w1, w2, wfc], axis=0)        # (4, D)
    b_all = jnp.concatenate([b1, b2, bfc], axis=1)        # (1, 4): [b1, b2, bfc0, bfc1]

    # Pipeline-VMEM bytes per batch row:
    #   e1 + e2:  2 arrays * 2 pipeline buffers * D * 4B
    #   output:   (tb, 2) block is lane-padded to 128 lanes, double-buffered.
    row_bytes = 16 * D + 2 * 128 * 4
    if block_b is None:
        budget = 24 << 20                                 # pipeline buffers target (all gens)
        block_b = max(8, min(8192, ((budget // row_bytes) // 8) * 8))

    # Full-array block for small B (always legal), otherwise a multiple-of-8 tile with a
    # ragged last block handled by Pallas (no wrapper-side padding or output slicing).
    tb = B if B <= block_b else block_b
    grid = (pl.cdiv(B, tb),)

    # Explicit scoped-VMEM limit: pipeline buffers + (sublane-padded, double-buffered)
    # weights + headroom.  Floor at the v5e default, cap well under v7x's 64 MiB physical.
    w_bytes = 2 * 8 * max(D, 128) * 4
    vmem_limit = int(min(max(tb * row_bytes + w_bytes + (8 << 20), 16 << 20), 48 << 20))

    vmem = pltpu.MemorySpace.VMEM
    smem = pltpu.MemorySpace.SMEM

    return pl.pallas_call(
        _attention_fusion_kernel,
        out_shape=jax.ShapeDtypeStruct((B, 2), jnp.float32),
        grid=grid,
        in_specs=[
            pl.BlockSpec((tb, D), lambda i: (i, 0), memory_space=vmem),   # e1 tile
            pl.BlockSpec((tb, D), lambda i: (i, 0), memory_space=vmem),   # e2 tile
            pl.BlockSpec((4, D), lambda i: (0, 0), memory_space=vmem),    # fused weights
            pl.BlockSpec(memory_space=smem),                              # fused biases (1,4)
        ],
        out_specs=pl.BlockSpec((tb, 2), lambda i: (i, 0), memory_space=vmem),
        compiler_params=pltpu.CompilerParams(
            dimension_semantics=("parallel",),            # megacore sharding on v7x
            vmem_limit_bytes=vmem_limit),
    )(e1, e2, w_all, b_all)


def make_params(key, embedding_dim):
    """Deterministic synthetic parameters matching the nn.Module shapes."""
    ks = jax.random.split(key, 6)
    scale = 1.0 / jnp.sqrt(embedding_dim)
    # attention_e1: Linear(D, 1) -> weight (1, D), bias (1, 1)
    w1 = jax.random.uniform(ks[0], (1, embedding_dim), jnp.float32, -scale, scale)
    b1 = jax.random.uniform(ks[1], (1, 1), jnp.float32, -scale, scale)
    # attention_e2: Linear(D, 1)
    w2 = jax.random.uniform(ks[2], (1, embedding_dim), jnp.float32, -scale, scale)
    b2 = jax.random.uniform(ks[3], (1, 1), jnp.float32, -scale, scale)
    # fc: Linear(D, 2) -> weight stored in native PyTorch layout (2, D)
    wfc = jax.random.uniform(ks[4], (2, embedding_dim), jnp.float32, -scale, scale)
    bfc = jax.random.uniform(ks[5], (1, 2), jnp.float32, -scale, scale)
    return w1, b1, w2, b2, wfc, bfc


def reference_forward(e1, e2, params):
    """Pure-JAX reference mirroring the PyTorch module exactly (full f32)."""
    w1, b1, w2, b2, wfc, bfc = params
    hp = jax.lax.Precision.HIGHEST
    a1 = jax.nn.sigmoid(jnp.dot(e1, w1.T, precision=hp) + b1[0, 0])
    a2 = jax.nn.sigmoid(jnp.dot(e2, w2.T, precision=hp) + b2[0, 0])
    tot = a1 + a2
    e_fused = (a1 / tot) * e1 + (a2 / tot) * e2
    return jnp.dot(e_fused, wfc.T, precision=hp) + bfc


if __name__ == "__main__":
    D = 128                                  # default embedding_dim of the module
    key = jax.random.PRNGKey(0)
    k1, k2, k3, k4, kp = jax.random.split(key, 5)
    params = make_params(kp, D)

    # --- small single-tile case (block == full array) ---
    B = 8
    e1 = jax.random.normal(k1, (B, D), jnp.float32)
    e2 = jax.random.normal(k2, (B, D), jnp.float32)
    logits = jax.block_until_ready(attention_fusion_forward(e1, e2, params))
    ref = reference_forward(e1, e2, params)
    assert logits.shape == (B, 2)
    assert jnp.allclose(logits, ref, atol=1e-5, rtol=1e-5), (
        f"mismatch: max err {jnp.max(jnp.abs(logits - ref))}")

    # --- small multi-tile ragged case (forced tiny tile): exercises the cdiv grid and the
    #     masked-writeback tail block, with no wrapper-side padding or output slicing ---
    B2 = 20
    e1b = jax.random.normal(k3, (B2, D), jnp.float32)
    e2b = jax.random.normal(k4, (B2, D), jnp.float32)
    logits2 = jax.block_until_ready(
        attention_fusion_forward(e1b, e2b, params, block_b=8))
    ref2 = reference_forward(e1b, e2b, params)
    assert logits2.shape == (B2, 2)
    assert jnp.allclose(logits2, ref2, atol=1e-5, rtol=1e-5), (
        f"mismatch: max err {jnp.max(jnp.abs(logits2 - ref2))}")

    print("KERNEL_OK")
</pallas_src>

<mosaic_0001>
module attributes {stable_mosaic.version = 11 : i64} {
  func.func @_attention_fusion_kernel(%arg0: i32, %arg1: memref<8x128xf32, #tpu.memory_space<vmem>>, %arg2: memref<8x128xf32, #tpu.memory_space<vmem>>, %arg3: memref<4x128xf32, #tpu.memory_space<vmem>>, %arg4: memref<1x4xf32, #tpu.memory_space<smem>>, %arg5: memref<8x2xf32, #tpu.memory_space<vmem>>) attributes {dimension_semantics = [#tpu.dimension_semantics<parallel>], iteration_bounds = array<i64: 1>, scalar_prefetch = 0 : i64, scratch_operands = 0 : i64, tpu.core_type = #tpu.core_type<tc>, window_params = [{transform_indices = @transform_0, window_bounds = array<i64: 8, 128>}, {transform_indices = @transform_1, window_bounds = array<i64: 8, 128>}, {pipeline_mode = #tpu.pipeline_mode<synchronous>, transform_indices = @transform_2, window_bounds = array<i64: 4, 128>}, {transform_indices = @transform_3, window_bounds = array<i64: 1, 4>}, {transform_indices = @transform_4, window_bounds = array<i64: 8, 2>}]} {
    %c0 = arith.constant 0 : index
    %c0_0 = arith.constant 0 : index
    %0 = vector.load %arg1[%c0, %c0_0] : memref<8x128xf32, #tpu.memory_space<vmem>>, vector<8x128xf32>
    %c0_1 = arith.constant 0 : index
    %c0_2 = arith.constant 0 : index
    %1 = vector.load %arg2[%c0_1, %c0_2] : memref<8x128xf32, #tpu.memory_space<vmem>>, vector<8x128xf32>
    %c0_3 = arith.constant 0 : index
    %c0_4 = arith.constant 0 : index
    %2 = vector.load %arg3[%c0_3, %c0_4] : memref<4x128xf32, #tpu.memory_space<vmem>>, vector<4x128xf32>
    %3 = vector.extract_strided_slice %2 {offsets = [0, 0], sizes = [1, 128], strides = [1, 1]} : vector<4x128xf32> to vector<1x128xf32>
    %4 = vector.broadcast %3 : vector<1x128xf32> to vector<8x128xf32>
    %5 = arith.mulf %0, %4 : vector<8x128xf32>
    %cst = arith.constant dense<0.000000e+00> : vector<8xf32>
    %6 = vector.multi_reduction <add>, %5, %cst [1] : vector<8x128xf32> to vector<8xf32>
    %7 = vector.shape_cast %6 : vector<8xf32> to vector<8x1xf32>
    %c0_5 = arith.constant 0 : index
    %c0_6 = arith.constant 0 : index
    %8 = memref.load %arg4[%c0_5, %c0_6] : memref<1x4xf32, #tpu.memory_space<smem>>
    %9 = vector.broadcast %8 : f32 to vector<8x1xf32>
    %10 = arith.addf %7, %9 : vector<8x1xf32>
    %11 = vector.extract_strided_slice %2 {offsets = [1, 0], sizes = [1, 128], strides = [1, 1]} : vector<4x128xf32> to vector<1x128xf32>
    %12 = vector.broadcast %11 : vector<1x128xf32> to vector<8x128xf32>
    %13 = arith.mulf %1, %12 : vector<8x128xf32>
    %cst_7 = arith.constant dense<0.000000e+00> : vector<8xf32>
    %14 = vector.multi_reduction <add>, %13, %cst_7 [1] : vector<8x128xf32> to vector<8xf32>
    %15 = vector.shape_cast %14 : vector<8xf32> to vector<8x1xf32>
    %c0_8 = arith.constant 0 : index
    %c1 = arith.constant 1 : index
    %16 = memref.load %arg4[%c0_8, %c1] : memref<1x4xf32, #tpu.memory_space<smem>>
    %17 = vector.broadcast %16 : f32 to vector<8x1xf32>
    %18 = arith.addf %15, %17 : vector<8x1xf32>
    %19 = vector.extract_strided_slice %2 {offsets = [2, 0], sizes = [1, 128], strides = [1, 1]} : vector<4x128xf32> to vector<1x128xf32>
    %20 = vector.broadcast %19 : vector<1x128xf32> to vector<8x128xf32>
    %21 = arith.mulf %0, %20 : vector<8x128xf32>
    %cst_9 = arith.constant dense<0.000000e+00> : vector<8xf32>
    %22 = vector.multi_reduction <add>, %21, %cst_9 [1] : vector<8x128xf32> to vector<8xf32>
    %23 = vector.shape_cast %22 : vector<8xf32> to vector<8x1xf32>
    %24 = vector.extract_strided_slice %2 {offsets = [3, 0], sizes = [1, 128], strides = [1, 1]} : vector<4x128xf32> to vector<1x128xf32>
    %25 = vector.broadcast %24 : vector<1x128xf32> to vector<8x128xf32>
    %26 = arith.mulf %0, %25 : vector<8x128xf32>
    %cst_10 = arith.constant dense<0.000000e+00> : vector<8xf32>
    %27 = vector.multi_reduction <add>, %26, %cst_10 [1] : vector<8x128xf32> to vector<8xf32>
    %28 = vector.shape_cast %27 : vector<8xf32> to vector<8x1xf32>
    %29 = vector.extract_strided_slice %2 {offsets = [2, 0], sizes = [1, 128], strides = [1, 1]} : vector<4x128xf32> to vector<1x128xf32>
    %30 = vector.broadcast %29 : vector<1x128xf32> to vector<8x128xf32>
    %31 = arith.mulf %1, %30 : vector<8x128xf32>
    %cst_11 = arith.constant dense<0.000000e+00> : vector<8xf32>
    %32 = vector.multi_reduction <add>, %31, %cst_11 [1] : vector<8x128xf32> to vector<8xf32>
    %33 = vector.shape_cast %32 : vector<8xf32> to vector<8x1xf32>
    %34 = vector.extract_strided_slice %2 {offsets = [3, 0], sizes = [1, 128], strides = [1, 1]} : vector<4x128xf32> to vector<1x128xf32>
    %35 = vector.broadcast %34 : vector<1x128xf32> to vector<8x128xf32>
    %36 = arith.mulf %1, %35 : vector<8x128xf32>
    %cst_12 = arith.constant dense<0.000000e+00> : vector<8xf32>
    %37 = vector.multi_reduction <add>, %36, %cst_12 [1] : vector<8x128xf32> to vector<8xf32>
    %38 = vector.shape_cast %37 : vector<8xf32> to vector<8x1xf32>
    %39 = arith.negf %10 : vector<8x1xf32>
    %40 = math.exp %39 : vector<8x1xf32>
    %cst_13 = arith.constant 1.000000e+00 : f32
    %41 = vector.broadcast %cst_13 : f32 to vector<8x1xf32>
    %42 = arith.addf %41, %40 : vector<8x1xf32>
    %43 = arith.divf %41, %42 : vector<8x1xf32>
    %44 = arith.negf %18 : vector<8x1xf32>
    %45 = math.exp %44 : vector<8x1xf32>
    %cst_14 = arith.constant 1.000000e+00 : f32
    %46 = vector.broadcast %cst_14 : f32 to vector<8x1xf32>
    %47 = arith.addf %46, %45 : vector<8x1xf32>
    %48 = arith.divf %46, %47 : vector<8x1xf32>
    %49 = arith.addf %43, %48 : vector<8x1xf32>
    %50 = tpu.reciprocal %49 : vector<8x1xf32> -> vector<8x1xf32>
    %51 = arith.mulf %43, %50 : vector<8x1xf32>
    %52 = arith.subf %23, %33 : vector<8x1xf32>
    %53 = arith.mulf %51, %52 : vector<8x1xf32>
    %54 = arith.addf %33, %53 : vector<8x1xf32>
    %c0_15 = arith.constant 0 : index
    %c2 = arith.constant 2 : index
    %55 = memref.load %arg4[%c0_15, %c2] : memref<1x4xf32, #tpu.memory_space<smem>>
    %56 = vector.broadcast %55 : f32 to vector<8x1xf32>
    %57 = arith.addf %54, %56 : vector<8x1xf32>
    %58 = arith.subf %28, %38 : vector<8x1xf32>
    %59 = arith.mulf %51, %58 : vector<8x1xf32>
    %60 = arith.addf %38, %59 : vector<8x1xf32>
    %c0_16 = arith.constant 0 : index
    %c3 = arith.constant 3 : index
    %61 = memref.load %arg4[%c0_16, %c3] : memref<1x4xf32, #tpu.memory_space<smem>>
    %62 = vector.broadcast %61 : f32 to vector<8x1xf32>
    %63 = arith.addf %60, %62 : vector<8x1xf32>
    %64 = tpu.concatenate %57, %63 in 1 : vector<8x1xf32>, vector<8x1xf32> -> vector<8x2xf32>
    %c0_17 = arith.constant 0 : index
    %c0_18 = arith.constant 0 : index
    %65 = vector.load %arg5[%c0_17, %c0_18] : memref<8x2xf32, #tpu.memory_space<vmem>>, vector<8x2xf32>
    tpu.vector_store %arg5[%c0_17, %c0_18], %64 {strides = array<i32>} : memref<8x2xf32, #tpu.memory_space<vmem>>, vector<8x2xf32>,
    return
  }
  func.func @transform_0(%arg0: i32) -> (i32, i32) {
    %c0_i32 = arith.constant 0 : i32
    %c0_i32_0 = arith.constant 0 : i32
    return %arg0, %c0_i32 : i32, i32
  }
  func.func @transform_1(%arg0: i32) -> (i32, i32) {
    %c0_i32 = arith.constant 0 : i32
    %c0_i32_0 = arith.constant 0 : i32
    return %arg0, %c0_i32 : i32, i32
  }
  func.func @transform_2(%arg0: i32) -> (i32, i32) {
    %c0_i32 = arith.constant 0 : i32
    %c0_i32_0 = arith.constant 0 : i32
    %c0_i32_1 = arith.constant 0 : i32
    return %c0_i32, %c0_i32_0 : i32, i32
  }
  func.func @transform_3(%arg0: i32) -> (i32, i32) {
    %c0_i32 = arith.constant 0 : i32
    %c0_i32_0 = arith.constant 0 : i32
    %c0_i32_1 = arith.constant 0 : i32
    return %c0_i32, %c0_i32_0 : i32, i32
  }
  func.func @transform_4(%arg0: i32) -> (i32, i32) {
    %c0_i32 = arith.constant 0 : i32
    %c0_i32_0 = arith.constant 0 : i32
    return %arg0, %c0_i32 : i32, i32
  }
}

</mosaic_0001>

<llo_original>
// kernel: tpu_custom_call.1
$region0: #{tpu_custom_call.1}
  #allocation0 [shape = 'u32[]', space=smem, size = 0x4, offset = 0x4, fixed_abs, tag = 'smem constant byte address 0x4 - core index']
  #allocation1 [shape = 'u32[144,128]{1,0:T(1,128)}', space=vmem, size = 0x12000, scoped, tag = 'internal scratch']
  %s0 = inlined_call_operand.hbm [shape: f32[8,128], index: 0, kind: input, shape index: {}]
  %s1 = inlined_call_operand.hbm [shape: f32[8,128], index: 1, kind: input, shape index: {}]
  %s2 = inlined_call_operand.vmem [shape: f32[4,128], index: 2, kind: input, shape index: {}]
  %s3 = inlined_call_operand.vmem [shape: f32[1,4], index: 3, kind: input, shape index: {}]
  %s4 = inlined_call_operand.vmem [shape: f32[8,2], index: 4, kind: output, shape index: {}]
  %s5 = sld [smem:[#allocation0]]
  $region38: #{tpu_custom_call.1} parent=0
    _
  %s7 = ssub.s32 1, %s5
  %s8 = scalar_select 0, %s7, %s5
  $region1: #{tpu_custom_call.1} parent=0
    #allocation2 [shape = 'u8[4096]{0}', space=vmem, size = 0x1000, scoped, tag = 'input window, operand 0, single buffered']
    #allocation3 [shape = 's32[1]{0}', space=sflag, size = 0x4, scoped, tag = 'scoped memory for tpu_custom_call.1']
    #allocation4 [shape = 's32[1]{0}', space=sflag, size = 0x4, scoped, tag = 'scoped memory for tpu_custom_call.1']
    #allocation5 [shape = 'u8[4096]{0}', space=vmem, size = 0x1000, scoped, tag = 'input window, operand 1, single buffered']
    #allocation6 [shape = 's32[1]{0}', space=sflag, size = 0x4, scoped, tag = 'scoped memory for tpu_custom_call.1']
    #allocation7 [shape = 'u8[512]{0}', space=smem, size = 0x200, scoped, tag = 'input window, operand 3, single buffered']
    %9 = vsyncpa [#allocation3], 0
    %10 = vsyncpa [#allocation6], 0
    %11 = vsyncpa [#allocation4], 0
    // Predicated region
    $region2: #{tpu_custom_call.1} parent=1 // pred_check
      _
    $region3: #{tpu_custom_call.1} parent=1 // pred_check_branch
      %13 = sbr.rel (0) target = $region5
    $region4: #{tpu_custom_call.1} parent=1 // pred_region
      %s15 = ssub.s32 128, 128
      %16 = vsyncadd [#allocation3], %s15
      %s18 = sshll.u32 [#allocation2], 4
      %s19 = int_to_ptr.vmem [resolvable:$true] %s18
      %21 = dma.hbm_to_vmem [thread:$0]  %s0, 128, %s19, [#allocation3]
    $region5: #{tpu_custom_call.1} parent=1 // pred_fallthru
      _
    // Predicated region
    $region6: #{tpu_custom_call.1} parent=1 // pred_check
      _
    $region7: #{tpu_custom_call.1} parent=1 // pred_check_branch
      %23 = sbr.rel (0) target = $region9
    $region8: #{tpu_custom_call.1} parent=1 // pred_region
      %s25 = ssub.s32 128, 128
      %26 = vsyncadd [#allocation6], %s25
      %s28 = sshll.u32 [#allocation5], 4
      %s29 = int_to_ptr.vmem [resolvable:$true] %s28
      %31 = dma.hbm_to_vmem [thread:$0]  %s1, 128, %s29, [#allocation6]
    $region9: #{tpu_custom_call.1} parent=1 // pred_fallthru
      _
    // Predicated region
    $region10: #{tpu_custom_call.1} parent=1 // pred_check
      _
    $region11: #{tpu_custom_call.1} parent=1 // pred_check_branch
      %33 = sbr.rel (0) target = $region13
    $region12: #{tpu_custom_call.1} parent=1 // pred_region
      _
    $region13: #{tpu_custom_call.1} parent=1 // pred_fallthru
      _
    // Predicated region
    $region14: #{tpu_custom_call.1} parent=1 // pred_check
      _
    $region15: #{tpu_custom_call.1} parent=1 // pred_check_branch
      %35 = sbr.rel (0) target = $region17
    $region16: #{tpu_custom_call.1} parent=1 // pred_region
      %s37 = ssub.s32 16, 16
      %38 = vsyncadd [#allocation4], %s37
      %s40 = sshll.u32 %s3, 4
      %s41 = int_to_ptr.vmem [resolvable:$true] %s40
      %43 = dma.vmem_to_smem %s41, 16, [#allocation7], [#allocation4]
    $region17: #{tpu_custom_call.1} parent=1 // pred_fallthru
      _
    // Predicated region
    $region18: #{tpu_custom_call.1} parent=1 // pred_check
      _
    $region19: #{tpu_custom_call.1} parent=1 // pred_check_branch
      %45 = sbr.rel (0) target = $region21
    $region20: #{tpu_custom_call.1} parent=1 // pred_region
      %46 = dma.done [#allocation3], 128
    $region21: #{tpu_custom_call.1} parent=1 // pred_fallthru
      _
    // Predicated region
    $region22: #{tpu_custom_call.1} parent=1 // pred_check
      _
    $region23: #{tpu_custom_call.1} parent=1 // pred_check_branch
      %48 = sbr.rel (0) target = $region25
    $region24: #{tpu_custom_call.1} parent=1 // pred_region
      %49 = dma.done [#allocation6], 128
    $region25: #{tpu_custom_call.1} parent=1 // pred_fallthru
      _
    // Predicated region
    $region26: #{tpu_custom_call.1} parent=1 // pred_check
      _
    $region27: #{tpu_custom_call.1} parent=1 // pred_check_branch
      %51 = sbr.rel (0) target = $region29
    $region28: #{tpu_custom_call.1} parent=1 // pred_region
      %52 = dma.done [#allocation4], 16
    $region29: #{tpu_custom_call.1} parent=1 // pred_fallthru
      _
    %53 = sfence
    %v54 = vld [vmem:[#allocation2] sm:$0xff]
    %v55 = vld [vmem:[#allocation5] sm:$0xff]
    %v56 = vld [vmem:[%s2] sm:$0xf]
    %v57 = vlaneseq
    %v58 = vshrl.u32 %v57, 7
    %v59 = vsub.s32 0, %v58
    %v60 = vrot.slane %v56, %v59
    %v61 = vmul.f32 %v54, %v60
    %62 = vadd.xlane.f32.xlu0 %v61
    %v63 = vpop.xlane.xlu0 %62
    %s64 = sld [smem:[#allocation7]]
    %v65 = vstv %s64
    %v66 = vadd.f32 %v63, %v65
    %v67 = vlaneseq
    %v68 = vshrl.u32 %v67, 7
    %v69 = vsub.s32 1, %v68
    %v70 = vrot.slane %v56, %v69
    %v71 = vmul.f32 %v55, %v70
    %72 = vadd.xlane.f32.xlu0 %v71
    %v73 = vpop.xlane.xlu0 %72
    %s74 = sld [smem:[#allocation7 + $0x1]]
    %v75 = vstv %s74
    %v76 = vadd.f32 %v73, %v75
    %v77 = vlaneseq
    %v78 = vshrl.u32 %v77, 7
    %v79 = vsub.s32 2, %v78
    %v80 = vrot.slane %v56, %v79
    %v81 = vmul.f32 %v54, %v80
    %82 = vadd.xlane.f32.xlu0 %v81
    %v83 = vpop.xlane.xlu0 %82
    %v84 = vlaneseq
    %v85 = vshrl.u32 %v84, 7
    %v86 = vsub.s32 3, %v85
    %v87 = vrot.slane %v56, %v86
    %v88 = vmul.f32 %v54, %v87
    %89 = vadd.xlane.f32.xlu0 %v88
    %v90 = vpop.xlane.xlu0 %89
    %v91 = vmul.f32 %v55, %v80
    %92 = vadd.xlane.f32.xlu0 %v91
    %v93 = vpop.xlane.xlu0 %92
    %v94 = vmul.f32 %v55, %v87
    %95 = vadd.xlane.f32.xlu0 %v94
    %v96 = vpop.xlane.xlu0 %95
    %v97 = vxor.u32 %v66, 2147483648
    %v98 = vmul.f32 %v97, 1.442695
    %v99 = vpow.pop %v98
    %v100 = vadd.f32 %v99, 1.0
    %v101 = vrcp.pop %v100
    %v102 = vmul.f32 1.0, %v101
    %v103 = vxor.u32 %v76, 2147483648
    %v104 = vmul.f32 %v103, 1.442695
    %v105 = vpow.pop %v104
    %v106 = vadd.f32 %v105, 1.0
    %v107 = vrcp.pop %v106
    %v108 = vmul.f32 1.0, %v107
    %v109 = vadd.f32 %v102, %v108
    %v110 = vrcp.pop %v109
    %v111 = vmul.f32 %v102, %v110
    %v112 = vsub.f32 %v83, %v93
    %v113 = vmul.f32 %v111, %v112
    %v114 = vadd.f32 %v93, %v113
    %s115 = sld [smem:[#allocation7 + $0x2]]
    %v116 = vstv %s115
    %v117 = vadd.f32 %v114, %v116
    %v118 = vsub.f32 %v90, %v96
    %v119 = vmul.f32 %v111, %v118
    %v120 = vadd.f32 %v96, %v119
    %s121 = sld [smem:[#allocation7 + $0x3]]
    %v122 = vstv %s121
    %v123 = vadd.f32 %v120, %v122
    %vm124 = vcmask 7168
    %v125 = vsel %vm124, %v117, %v123
    %vm126 = vcmask 15360
    %127 = vst.msk [vmem:[%s4] sm:$0xff] %vm126, %v125
    // Predicated region
    $region30: #{tpu_custom_call.1} parent=1 // pred_check
      _
    $region31: #{tpu_custom_call.1} parent=1 // pred_check_branch
      %129 = sbr.rel (0) target = $region33
    $region32: #{tpu_custom_call.1} parent=1 // pred_region
      _
    $region33: #{tpu_custom_call.1} parent=1 // pred_fallthru
      _
    // Predicated region
    $region34: #{tpu_custom_call.1} parent=1 // pred_check
      _
    $region35: #{tpu_custom_call.1} parent=1 // pred_check_branch
      %131 = sbr.rel (0) target = $region37
    $region36: #{tpu_custom_call.1} parent=1 // pred_region
      _
    $region37: #{tpu_custom_call.1} parent=1 // pred_fallthru
      _
    %132 = vsyncpa [#allocation3], 1
    %133 = vsyncpa [#allocation6], 1
    %134 = vsyncpa [#allocation4], 1

</llo_original>
